<compile_context>
chip_gen: v7x
topology: tpu7x:2x2x1
jax: 0.10.0
libtpu: 0.0.40
codegen_flags: <defaults>
</compile_context>

<pallas_src>
import functools
import math

import jax
import jax.numpy as jnp
from jax import lax
from jax.experimental import pallas as pl
from jax.experimental.pallas import tpu as pltpu

_MiB = 1024 * 1024
_HW_CACHE = {}


def _hw_config():
    """(vmem_limit_bytes, big_vmem) — generation aware, safe fallback if unknown."""
    if "cfg" in _HW_CACHE:
        return _HW_CACHE["cfg"]
    phys = None
    try:
        get_info = getattr(pltpu, "get_tpu_info", None)
        if get_info is not None:
            phys = int(getattr(get_info(), "vmem_capacity_bytes", 0)) or None
    except Exception:
        phys = None
    if phys is None:
        cfg = (32 * _MiB, False)      # unknown chip: conservative, works everywhere
    elif phys >= 100 * _MiB:
        cfg = (96 * _MiB, True)       # v5e / v6e: 128 MiB physical VMEM
    else:
        cfg = (48 * _MiB, False)      # v7x: 64 MiB physical VMEM per TensorCore
    _HW_CACHE["cfg"] = cfg
    return cfg


def _pick_divisor(dim, target, align):
    """Largest `align`-multiple divisor of `dim` that is <= target (dim if dim<=target), else None."""
    if dim <= target:
        return dim
    cand = (target // align) * align
    while cand >= align:
        if dim % cand == 0:
            return cand
        cand -= align
    return None


def _choose_tile(dim, target, aligns):
    """Return (tile, padded_dim) with tile | padded_dim.  Prefers MXU-friendly aligned
    divisors (256 first), pads with zeros when only degenerate divisors exist."""
    if dim <= target:
        return dim, dim
    for a in aligns:
        t = _pick_divisor(dim, target, a)
        if t is not None and t * 4 >= target:   # reject tiny tiles; padding is better
            return t, dim
    a = aligns[-1]
    tile = max(a, (target // a) * a)
    padded = -(-dim // tile) * tile
    return tile, padded


# ----------------------------------------------------------------------------
# Tiled linear (matmul) kernels
# ----------------------------------------------------------------------------
def _matmul_kernel(x_ref, w_ref, o_ref, acc_ref):
    @pl.when(pl.program_id(2) == 0)
    def _():
        acc_ref[...] = jnp.zeros(acc_ref.shape, acc_ref.dtype)

    acc_ref[...] += jnp.dot(x_ref[...], w_ref[...],
                            preferred_element_type=jnp.float32)

    @pl.when(pl.program_id(2) == pl.num_programs(2) - 1)
    def _():
        o_ref[...] = acc_ref[...].astype(o_ref.dtype)


def _matmul_bias_kernel(x_ref, w_ref, b_ref, o_ref, acc_ref):
    @pl.when(pl.program_id(2) == 0)
    def _():
        acc_ref[...] = jnp.zeros(acc_ref.shape, acc_ref.dtype)

    acc_ref[...] += jnp.dot(x_ref[...], w_ref[...],
                            preferred_element_type=jnp.float32)

    @pl.when(pl.program_id(2) == pl.num_programs(2) - 1)
    def _():
        o_ref[...] = (acc_ref[...] + b_ref[...].astype(jnp.float32)).astype(o_ref.dtype)


def pallas_linear(x2d, w, b=None, *, tm_target=None, tn_target=None, tk_target=None):
    """x2d: (R, Cin), w: (Cin, Cout), b: (Cout,) or None -> (R, Cout)."""
    R, Cin = x2d.shape
    Cout = w.shape[1]
    vmem_limit, big = _hw_config()
    if tm_target is None:
        tm_target = 512 if big else 256
    if tn_target is None:
        tn_target = 512 if big else 256
    if tk_target is None:
        tk_target = 512

    tm, Rp = _choose_tile(R, tm_target, (256, 8))
    tn, Np = _choose_tile(Cout, tn_target, (256, 128))
    tk, Kp = _choose_tile(Cin, tk_target, (256, 128))

    dbytes = x2d.dtype.itemsize
    if (Rp, Kp) != (R, Cin):
        x2d = jnp.pad(x2d, ((0, Rp - R), (0, Kp - Cin)))
    if (Kp, Np) != (Cin, Cout):
        w = jnp.pad(w, ((0, Kp - Cin), (0, Np - Cout)))

    grid = (Rp // tm, Np // tn, Kp // tk)
    out_shape = jax.ShapeDtypeStruct((Rp, Np), x2d.dtype)
    compiler_params = pltpu.CompilerParams(
        dimension_semantics=("parallel", "parallel", "arbitrary"),
        vmem_limit_bytes=vmem_limit)
    cost = pl.CostEstimate(flops=2 * Rp * Kp * Np, transcendentals=0,
                           bytes_accessed=(Rp * Kp + Kp * Np + Rp * Np) * dbytes)

    x_spec = pl.BlockSpec((tm, tk), lambda i, j, k: (i, k))
    w_spec = pl.BlockSpec((tk, tn), lambda i, j, k: (k, j))
    o_spec = pl.BlockSpec((tm, tn), lambda i, j, k: (i, j))
    scratch = [pltpu.VMEM((tm, tn), jnp.float32)]

    if b is None:
        out = pl.pallas_call(
            _matmul_kernel, out_shape=out_shape, grid=grid,
            in_specs=[x_spec, w_spec], out_specs=o_spec,
            scratch_shapes=scratch, compiler_params=compiler_params,
            cost_estimate=cost,
        )(x2d, w)
    else:
        if Np != Cout:
            b = jnp.pad(b, (0, Np - Cout))
        b2d = b.reshape(1, Np)
        b_spec = pl.BlockSpec((1, tn), lambda i, j, k: (0, j))
        out = pl.pallas_call(
            _matmul_bias_kernel, out_shape=out_shape, grid=grid,
            in_specs=[x_spec, w_spec, b_spec], out_specs=o_spec,
            scratch_shapes=scratch, compiler_params=compiler_params,
            cost_estimate=cost,
        )(x2d, w, b2d)

    if (Rp, Np) != (R, Cout):
        out = out[:R, :Cout]
    return out


# ----------------------------------------------------------------------------
# Flash-style attention kernel: heads are lane-slabs of (seq, H*d) blocks
# ----------------------------------------------------------------------------
def _attn_init(m_scr, l_scr, acc_scr):
    m_scr[...] = jnp.full(m_scr.shape, -jnp.inf, dtype=m_scr.dtype)
    l_scr[...] = jnp.zeros(l_scr.shape, l_scr.dtype)
    acc_scr[...] = jnp.zeros(acc_scr.shape, acc_scr.dtype)


def _attn_update_tile(q_all, k_all, v_all, bias, m_scr, l_scr, acc_scr, *, heads, dim_head):
    """One online-softmax update for one KV tile.  Static per-head loop over lane slabs
    of the (tq, H*d) / (tkv, H*d) blocks; NT-form 2D matmuls (no transposes anywhere)."""
    d = dim_head
    for h in range(heads):
        sl = slice(h * d, (h + 1) * d)
        q_h = q_all[:, sl]                                          # (tq,  d)
        k_h = k_all[:, sl]                                          # (tkv, d)
        v_h = v_all[:, sl]                                          # (tkv, d)
        s = lax.dot_general(q_h, k_h, (((1,), (1,)), ((), ())),
                            preferred_element_type=jnp.float32)     # (tq, tkv) f32
        if bias is not None:
            s = s + bias                                            # additive mask bias
        m_prev = m_scr[h]                                           # (tq, 1)
        m_new = jnp.maximum(m_prev, jnp.max(s, axis=-1, keepdims=True))
        alpha = jnp.exp(m_prev - m_new)
        p = jnp.exp(s - m_new)                                      # (tq, tkv) f32
        l_scr[h] = alpha * l_scr[h] + jnp.sum(p, axis=-1, keepdims=True)
        pv = jnp.dot(p.astype(v_h.dtype), v_h,
                     preferred_element_type=jnp.float32)            # (tq, d)
        acc_scr[h] = alpha * acc_scr[h] + pv
        m_scr[h] = m_new


def _attn_finalize(o_ref, l_scr, acc_scr, *, heads, dim_head, guard_empty):
    # Output block is a lane-dense (tq, H*d) slab; each head writes its lane range.
    d = dim_head
    for h in range(heads):
        l_h = l_scr[h]
        if guard_empty:
            # Only hit when every key of this batch element is masked; emit zeros
            # instead of NaN (reference produces a meaningless uniform average there).
            l_h = jnp.where(l_h == 0.0, jnp.float32(1.0), l_h)
        inv = pl.reciprocal(l_h, approx=False)      # exact; (tq,1) once per q-tile
        o_ref[0, :, h * d:(h + 1) * d] = (acc_scr[h] * inv).astype(o_ref.dtype)


def _flash_attn_kernel(q_ref, k_ref, v_ref, o_ref, m_scr, l_scr, acc_scr,
                       *, scale, heads, dim_head):
    kv_idx = pl.program_id(2)

    @pl.when(kv_idx == 0)
    def _():
        _attn_init(m_scr, l_scr, acc_scr)

    q_all = q_ref[0] * jnp.asarray(scale, dtype=q_ref.dtype)   # fold scale into q
    _attn_update_tile(q_all, k_ref[0], v_ref[0], None, m_scr, l_scr, acc_scr,
                      heads=heads, dim_head=dim_head)

    @pl.when(kv_idx == pl.num_programs(2) - 1)
    def _():
        _attn_finalize(o_ref, l_scr, acc_scr, heads=heads, dim_head=dim_head,
                       guard_empty=False)


def _flash_attn_masked_kernel(counts_ref, q_ref, k_ref, v_ref, mask_ref, o_ref,
                              m_scr, l_scr, acc_scr, *, scale, heads, dim_head):
    b = pl.program_id(0)
    kv_idx = pl.program_id(2)

    @pl.when(kv_idx == 0)
    def _():
        _attn_init(m_scr, l_scr, acc_scr)

    # Skip KV tiles with zero visible keys (scalar-prefetched per (batch, tile) counts).
    @pl.when(counts_ref[b, kv_idx] > 0)
    def _():
        bias = jnp.where(mask_ref[0] > 0, jnp.float32(0.0), jnp.float32(-1e30))  # (1, tkv)
        q_all = q_ref[0] * jnp.asarray(scale, dtype=q_ref.dtype)
        _attn_update_tile(q_all, k_ref[0], v_ref[0], bias, m_scr, l_scr, acc_scr,
                          heads=heads, dim_head=dim_head)

    @pl.when(kv_idx == pl.num_programs(2) - 1)
    def _():
        _attn_finalize(o_ref, l_scr, acc_scr, heads=heads, dim_head=dim_head,
                       guard_empty=True)


def pallas_flash_attention(q, k, v, scale, mask=None, *, heads, dim_head,
                           tq_target=None, tkv_target=None):
    """q: (B, n, H*d), k/v: (B, m, H*d), mask: (B, 1, m) int32 or None -> (B, n, H*d)."""
    B, n, inner = q.shape
    m = k.shape[1]
    assert inner == heads * dim_head
    vmem_limit, big = _hw_config()
    dbytes = q.dtype.itemsize

    if tq_target is None:
        tq_target = 256 if big else 128
    if tkv_target is None:
        # Budget-aware KV tile: keep double-buffered K+V under ~35% of the VMEM limit;
        # whenever m fits, tkv == m keeps K/V resident across q-tiles (one DMA / batch).
        rows = int(0.35 * vmem_limit) // max(1, 2 * 2 * inner * dbytes)
        tkv_target = max(512, min(2048 if big else 1024, (rows // 128) * 128))

    tq = _pick_divisor(n, tq_target, 8) or n
    # v7x megacore: keep the parallel part of the grid (B * n/tq) >= 2 when possible.
    if B * (n // tq) < 2:
        half = _pick_divisor(n, max(8, n // 2), 8)
        if half is not None and half < n:
            tq = half
    tkv = m if m <= tkv_target else (_pick_divisor(m, tkv_target, 128) or m)
    # TODO(synk): huge prime-ish n/m fall back to full-dim blocks (valid but VMEM-heavy);
    #             a pad+mask path would be needed to tile those shapes.

    grid = (B, n // tq, m // tkv)
    out_shape = jax.ShapeDtypeStruct((B, n, inner), q.dtype)
    compiler_params = pltpu.CompilerParams(
        dimension_semantics=("parallel", "parallel", "arbitrary"),
        vmem_limit_bytes=vmem_limit)
    cost = pl.CostEstimate(
        flops=4 * B * heads * n * m * dim_head,
        transcendentals=B * heads * n * m,
        bytes_accessed=(q.size + k.size + v.size + B * n * inner) * dbytes)
    scratch = [pltpu.VMEM((heads, tq, 1), jnp.float32),          # running max
               pltpu.VMEM((heads, tq, 1), jnp.float32),          # running denominator
               pltpu.VMEM((heads, tq, dim_head), jnp.float32)]   # running numerator

    if mask is None:
        q_spec = pl.BlockSpec((1, tq, inner), lambda b, i, j: (b, i, 0))
        k_spec = pl.BlockSpec((1, tkv, inner), lambda b, i, j: (b, j, 0))
        v_spec = pl.BlockSpec((1, tkv, inner), lambda b, i, j: (b, j, 0))
        o_spec = pl.BlockSpec((1, tq, inner), lambda b, i, j: (b, i, 0))
        return pl.pallas_call(
            functools.partial(_flash_attn_kernel, scale=scale, heads=heads,
                              dim_head=dim_head),
            out_shape=out_shape, grid=grid,
            in_specs=[q_spec, k_spec, v_spec], out_specs=o_spec,
            scratch_shapes=scratch, compiler_params=compiler_params,
            cost_estimate=cost,
        )(q, k, v)

    # Masked path: scalar-prefetch visible-key counts per (batch, kv-tile).
    nkv = m // tkv
    counts = jnp.sum(mask.reshape(B, nkv, tkv) > 0, axis=-1).astype(jnp.int32)  # (B, nkv)
    q_spec = pl.BlockSpec((1, tq, inner), lambda b, i, j, c: (b, i, 0))
    k_spec = pl.BlockSpec((1, tkv, inner), lambda b, i, j, c: (b, j, 0))
    v_spec = pl.BlockSpec((1, tkv, inner), lambda b, i, j, c: (b, j, 0))
    mask_spec = pl.BlockSpec((1, 1, tkv), lambda b, i, j, c: (b, 0, j))
    o_spec = pl.BlockSpec((1, tq, inner), lambda b, i, j, c: (b, i, 0))
    grid_spec = pltpu.PrefetchScalarGridSpec(
        num_scalar_prefetch=1, grid=grid,
        in_specs=[q_spec, k_spec, v_spec, mask_spec], out_specs=o_spec,
        scratch_shapes=scratch)
    return pl.pallas_call(
        functools.partial(_flash_attn_masked_kernel, scale=scale, heads=heads,
                          dim_head=dim_head),
        out_shape=out_shape, grid_spec=grid_spec,
        compiler_params=compiler_params, cost_estimate=cost,
    )(counts, q, k, v, mask)


# ----------------------------------------------------------------------------
# Attention module (parameters + forward)
# ----------------------------------------------------------------------------
def init_attention_params(key, query_dim, context_dim=None, heads=8, dim_head=64):
    """Deterministic init mimicking nn.Linear default (U(-1/sqrt(fan_in), +))."""
    context_dim = query_dim if context_dim is None else context_dim
    inner_dim = dim_head * heads
    k1, k2, k3, k4 = jax.random.split(key, 4)

    def uniform(k, shape, fan_in):
        bound = 1.0 / math.sqrt(fan_in)
        return jax.random.uniform(k, shape, jnp.float32, -bound, bound)

    # Weights stored as (in, out) so the kernels compute x @ W directly.
    return {
        "w_q": uniform(k1, (query_dim, inner_dim), query_dim),
        "w_kv": uniform(k2, (context_dim, 2 * inner_dim), context_dim),
        "w_out": uniform(k3, (inner_dim, query_dim), inner_dim),
        "b_out": uniform(k4, (query_dim,), inner_dim),
    }


def attention_forward(params, x, context=None, mask=None, heads=8, dim_head=64):
    """Matches Attention.forward (dropout=0.0 -> identity)."""
    # TODO(synk): attention-prob dropout (p > 0) not implemented; module default is 0.0.
    b, n, query_dim = x.shape
    inner = heads * dim_head
    scale = dim_head ** (-0.5)

    if context is None:
        # Self-attention: fuse q and kv projections -> x read from HBM once.
        w_qkv = jnp.concatenate([params["w_q"], params["w_kv"]], axis=1)
        qkv = pallas_linear(x.reshape(b * n, query_dim), w_qkv).reshape(b, n, 3 * inner)
        q = qkv[..., :inner]
        k = qkv[..., inner:2 * inner]
        v = qkv[..., 2 * inner:]
    else:
        m = context.shape[1]
        q = pallas_linear(x.reshape(b * n, query_dim), params["w_q"]).reshape(b, n, inner)
        kv = pallas_linear(context.reshape(b * m, context.shape[-1]),
                           params["w_kv"]).reshape(b, m, 2 * inner)
        k, v = kv[..., :inner], kv[..., inner:]

    mask_b = None
    if mask is not None:
        # 'b ... -> b (...)' over the key axis; heads handled inside the kernel.
        mask_b = mask.reshape(b, 1, -1).astype(jnp.int32)        # (B, 1, m)

    # Attention core runs directly on the (B, seq, H*d) projection layout: no head
    # split/merge transposes in XLA and a lane-dense (B, n, H*d) output.
    out = pallas_flash_attention(q, k, v, scale, mask_b, heads=heads, dim_head=dim_head)

    # to_out (Linear with bias).
    out = pallas_linear(out.reshape(b * n, inner), params["w_out"], params["b_out"])
    return out.reshape(b, n, query_dim)


# ----------------------------------------------------------------------------
# Main
# ----------------------------------------------------------------------------
if __name__ == "__main__":
    key = jax.random.PRNGKey(0)
    k_param, k_x, k_ctx, k_mask = jax.random.split(key, 4)

    # Small shapes: batch=2, seq=8, query_dim=32, heads=2, dim_head=16 (inner=32).
    B, N, QUERY_DIM = 2, 8, 32
    HEADS, DIM_HEAD = 2, 16
    M_CTX = 16

    params = init_attention_params(k_param, QUERY_DIM, heads=HEADS, dim_head=DIM_HEAD)
    x = jax.random.normal(k_x, (B, N, QUERY_DIM), dtype=jnp.float32)
    ctx = jax.random.normal(k_ctx, (B, M_CTX, QUERY_DIM), dtype=jnp.float32)
    mask = jax.random.bernoulli(k_mask, 0.6, (B, N))
    mask = mask.at[:, 0].set(True)   # keep >=1 visible key per batch element

    # Pure-JAX reference (same math as the PyTorch module, dropout identity).
    def ref_forward(p, x_, context=None, msk=None):
        h, d = HEADS, DIM_HEAD
        inner = h * d
        c = x_ if context is None else context
        b_, n_, _ = x_.shape
        q = x_ @ p["w_q"]
        kv = c @ p["w_kv"]
        k_, v_ = kv[..., :inner], kv[..., inner:]

        def sh(t):
            bb, ss, _ = t.shape
            return t.reshape(bb, ss, h, d).transpose(0, 2, 1, 3).reshape(bb * h, ss, d)

        q, k_, v_ = map(sh, (q, k_, v_))
        sim = jnp.einsum("bid,bjd->bij", q, k_) * (d ** -0.5)
        if msk is not None:
            mflat = msk.reshape(b_, -1)
            mrep = jnp.repeat(mflat, h, axis=0)[:, None, :]
            sim = jnp.where(mrep, sim, -jnp.finfo(sim.dtype).max)
        attn = jax.nn.softmax(sim, axis=-1)
        o = jnp.einsum("bij,bjd->bid", attn, v_)
        o = o.reshape(b_, h, n_, d).transpose(0, 2, 1, 3).reshape(b_, n_, inner)
        return o @ p["w_out"] + p["b_out"]

    # 1) self-attention, no mask  2) self-attention with mask  3) cross-attention
    out1 = attention_forward(params, x, heads=HEADS, dim_head=DIM_HEAD)
    out2 = attention_forward(params, x, mask=mask, heads=HEADS, dim_head=DIM_HEAD)
    out3 = attention_forward(params, x, context=ctx, heads=HEADS, dim_head=DIM_HEAD)
    jax.block_until_ready((out1, out2, out3))

    ref1 = ref_forward(params, x)
    ref2 = ref_forward(params, x, msk=mask)
    ref3 = ref_forward(params, x, context=ctx)
    for o_, r_ in ((out1, ref1), (out2, ref2), (out3, ref3)):
        assert o_.shape == (B, N, QUERY_DIM)
        assert jnp.allclose(o_, r_, atol=5e-3, rtol=5e-3), "mismatch vs reference"

    # Tiled-path sanity: multi q-/kv-tiles, online softmax, masked-tile skipping.
    kq, kk, kv_, km2, kx2, kw2 = jax.random.split(jax.random.PRNGKey(1), 6)
    Bt, Ht, St, Dt = 2, 2, 256, 16
    innert = Ht * Dt
    qt = jax.random.normal(kq, (Bt, St, innert), jnp.float32)
    kt = jax.random.normal(kk, (Bt, St, innert), jnp.float32)
    vt = jax.random.normal(kv_, (Bt, St, innert), jnp.float32)

    def attn_ref(qr, kr, vr, msk=None):
        def sh(t):
            return t.reshape(t.shape[0], t.shape[1], Ht, Dt).transpose(0, 2, 1, 3)
        qh, kh, vh = map(sh, (qr, kr, vr))
        sim = jnp.einsum("bhid,bhjd->bhij", qh, kh) * (Dt ** -0.5)
        if msk is not None:
            sim = jnp.where(msk[:, None, None, :] > 0, sim, -jnp.finfo(sim.dtype).max)
        o = jnp.einsum("bhij,bhjd->bhid", jax.nn.softmax(sim, -1), vh)
        return o.transpose(0, 2, 1, 3).reshape(qr.shape[0], qr.shape[1], innert)

    ot = pallas_flash_attention(qt, kt, vt, Dt ** -0.5, None, heads=Ht, dim_head=Dt,
                                tq_target=128, tkv_target=128)
    assert jnp.allclose(jax.block_until_ready(ot), attn_ref(qt, kt, vt),
                        atol=5e-3, rtol=5e-3), "flash tiled path mismatch"

    # Masked + one fully-masked KV tile for batch 0 (exercises the tile-skip path).
    maskt = jax.random.bernoulli(km2, 0.7, (Bt, St))
    maskt = maskt.at[:, 0].set(True)
    maskt = maskt.at[0, 128:].set(False)
    maskt_b = maskt.reshape(Bt, 1, St).astype(jnp.int32)
    otm = pallas_flash_attention(qt, kt, vt, Dt ** -0.5, maskt_b, heads=Ht, dim_head=Dt,
                                 tq_target=128, tkv_target=128)
    assert jnp.allclose(jax.block_until_ready(otm),
                        attn_ref(qt, kt, vt, maskt.astype(jnp.int32)),
                        atol=5e-3, rtol=5e-3), "flash masked/skip path mismatch"

    # Tiled + row-padded matmul path (300 rows has no 8-aligned divisor <= 128).
    xm = jax.random.normal(kx2, (300, 256), jnp.float32)
    wm = jax.random.normal(kw2, (256, 256), jnp.float32) * 0.05
    ym = pallas_linear(xm, wm, tm_target=128, tn_target=128, tk_target=128)
    assert jnp.allclose(jax.block_until_ready(ym), xm @ wm, atol=1e-3, rtol=1e-3), \
        "tiled/padded matmul mismatch"

    print("KERNEL_OK")
</pallas_src>

<mosaic_0001>
module attributes {stable_mosaic.version = 11 : i64} {
  func.func @_matmul_kernel(%arg0: i32, %arg1: i32, %arg2: i32, %arg3: memref<16x32xf32, #tpu.memory_space<vmem>>, %arg4: memref<32x96xf32, #tpu.memory_space<vmem>>, %arg5: memref<16x96xf32, #tpu.memory_space<vmem>>, %arg6: memref<16x96xf32, #tpu.memory_space<vmem>>) attributes {dimension_semantics = [#tpu.dimension_semantics<parallel>, #tpu.dimension_semantics<parallel>, #tpu.dimension_semantics<arbitrary>], iteration_bounds = array<i64: 1, 1, 1>, scalar_prefetch = 0 : i64, scratch_operands = 1 : i64, tpu.core_type = #tpu.core_type<tc>, window_params = [{transform_indices = @transform_0, window_bounds = array<i64: 16, 32>}, {transform_indices = @transform_1, window_bounds = array<i64: 32, 96>}, {transform_indices = @transform_2, window_bounds = array<i64: 16, 96>}]} {
    %c0_i32 = arith.constant 0 : i32
    %0 = arith.cmpi eq, %arg2, %c0_i32 : i32
    %1 = arith.extui %0 : i1 to i32
    %c0_i32_0 = arith.constant 0 : i32
    %2 = arith.cmpi ne, %1, %c0_i32_0 : i32
    scf.if %2 {
      %cst_10 = arith.constant 0.000000e+00 : f32
      %12 = vector.broadcast %cst_10 : f32 to vector<16x96xf32>
      %c0_11 = arith.constant 0 : index
      %c0_12 = arith.constant 0 : index
      %13 = vector.load %arg6[%c0_11, %c0_12] : memref<16x96xf32, #tpu.memory_space<vmem>>, vector<16x96xf32>
      tpu.vector_store %arg6[%c0_11, %c0_12], %12 {strides = array<i32>} : memref<16x96xf32, #tpu.memory_space<vmem>>, vector<16x96xf32>,
    } else {
    }
    %c0 = arith.constant 0 : index
    %c0_1 = arith.constant 0 : index
    %3 = vector.load %arg6[%c0, %c0_1] : memref<16x96xf32, #tpu.memory_space<vmem>>, vector<16x96xf32>
    %c0_2 = arith.constant 0 : index
    %c0_3 = arith.constant 0 : index
    %4 = vector.load %arg3[%c0_2, %c0_3] : memref<16x32xf32, #tpu.memory_space<vmem>>, vector<16x32xf32>
    %c0_4 = arith.constant 0 : index
    %c0_5 = arith.constant 0 : index
    %5 = vector.load %arg4[%c0_4, %c0_5] : memref<32x96xf32, #tpu.memory_space<vmem>>, vector<32x96xf32>
    %cst = arith.constant dense<0.000000e+00> : vector<16x96xf32>
    %6 = tpu.matmul %4, %5, %cst {dimension_numbers = #tpu.dot_dimension_numbers<[1], [0], [0], [1], [0, 0, 1, 1], [], []>} : vector<16x32xf32>, vector<32x96xf32>, vector<16x96xf32> -> vector<16x96xf32>
    %7 = arith.addf %3, %6 : vector<16x96xf32>
    %c0_6 = arith.constant 0 : index
    %c0_7 = arith.constant 0 : index
    %8 = vector.load %arg6[%c0_6, %c0_7] : memref<16x96xf32, #tpu.memory_space<vmem>>, vector<16x96xf32>
    tpu.vector_store %arg6[%c0_6, %c0_7], %7 {strides = array<i32>} : memref<16x96xf32, #tpu.memory_space<vmem>>, vector<16x96xf32>,
    %c0_i32_8 = arith.constant 0 : i32
    %9 = arith.cmpi eq, %arg2, %c0_i32_8 : i32
    %10 = arith.extui %9 : i1 to i32
    %c0_i32_9 = arith.constant 0 : i32
    %11 = arith.cmpi ne, %10, %c0_i32_9 : i32
    scf.if %11 {
      %c0_10 = arith.constant 0 : index
      %c0_11 = arith.constant 0 : index
      %12 = vector.load %arg6[%c0_10, %c0_11] : memref<16x96xf32, #tpu.memory_space<vmem>>, vector<16x96xf32>
      %c0_12 = arith.constant 0 : index
      %c0_13 = arith.constant 0 : index
      %13 = vector.load %arg5[%c0_12, %c0_13] : memref<16x96xf32, #tpu.memory_space<vmem>>, vector<16x96xf32>
      tpu.vector_store %arg5[%c0_12, %c0_13], %12 {strides = array<i32>} : memref<16x96xf32, #tpu.memory_space<vmem>>, vector<16x96xf32>,
    } else {
    }
    return
  }
  func.func @transform_0(%arg0: i32, %arg1: i32, %arg2: i32) -> (i32, i32) {
    %c0_i32 = arith.constant 0 : i32
    return %arg0, %arg2 : i32, i32
  }
  func.func @transform_1(%arg0: i32, %arg1: i32, %arg2: i32) -> (i32, i32) {
    %c0_i32 = arith.constant 0 : i32
    return %arg2, %arg1 : i32, i32
  }
  func.func @transform_2(%arg0: i32, %arg1: i32, %arg2: i32) -> (i32, i32) {
    %c0_i32 = arith.constant 0 : i32
    return %arg0, %arg1 : i32, i32
  }
}

</mosaic_0001>

<llo_original>
// kernel: tpu_custom_call.1
$region0: #{tpu_custom_call.1}
  #allocation0 [shape = 'u32[]', space=smem, size = 0x4, offset = 0x4, fixed_abs, tag = 'smem constant byte address 0x4 - core index']
  #allocation1 [shape = 'u32[144,128]{1,0:T(1,128)}', space=vmem, size = 0x12000, scoped, tag = 'internal scratch']
  #allocation2 [shape = 'f32[16,96]{1,0:T(8,128)}', space=vmem, size = 0x2000, scoped, tag = 'scratch operand']
  %s0 = inlined_call_operand.hbm [shape: f32[16,32], index: 0, kind: input, shape index: {}]
  %s1 = inlined_call_operand.hbm [shape: f32[32,96], index: 1, kind: input, shape index: {}]
  %s2 = inlined_call_operand.hbm [shape: f32[16,96], index: 2, kind: output, shape index: {}]
  %s3 = sld [smem:[#allocation0]]
  $region34: #{tpu_custom_call.1} parent=0
    _
  %s5 = ssub.s32 1, %s3
  %s6 = scalar_select 0, %s5, %s3
  $region1: #{tpu_custom_call.1} parent=0
    #allocation3 [shape = 'u8[8192]{0}', space=vmem, size = 0x2000, scoped, tag = 'input window, operand 0, single buffered']
    #allocation4 [shape = 's32[1]{0}', space=sflag, size = 0x4, scoped, tag = 'scoped memory for tpu_custom_call.1']
    #allocation5 [shape = 's32[1]{0}', space=sflag, size = 0x4, scoped, tag = 'scoped memory for tpu_custom_call.1']
    #allocation6 [shape = 'u8[16384]{0}', space=vmem, size = 0x4000, scoped, tag = 'input window, operand 1, single buffered']
    #allocation7 [shape = 's32[1]{0}', space=sflag, size = 0x4, scoped, tag = 'scoped memory for tpu_custom_call.1']
    #allocation8 [shape = 'u8[8192]{0}', space=vmem, size = 0x2000, scoped, tag = 'output window, operand 0, single buffered']
    %7 = vsyncpa [#allocation4], 0
    %8 = vsyncpa [#allocation7], 0
    %9 = vsyncpa [#allocation5], 0
    // Predicated region
    $region2: #{tpu_custom_call.1} parent=1 // pred_check
      _
    $region3: #{tpu_custom_call.1} parent=1 // pred_check_branch
      %11 = sbr.rel (0) target = $region5
    $region4: #{tpu_custom_call.1} parent=1 // pred_region
      %s13 = ssub.s32 256, 256
      %14 = vsyncadd [#allocation4], %s13
      %s15 = sshll.u32 [#allocation3], 4
      %s16 = int_to_ptr.vmem [resolvable:$true] %s15
      %21 = dma.hbm_to_vmem [thread:$0]  %s0, 256, %s16, [#allocation4], 128, 128, 8
    $region5: #{tpu_custom_call.1} parent=1 // pred_fallthru
      _
    // Predicated region
    $region6: #{tpu_custom_call.1} parent=1 // pred_check
      _
    $region7: #{tpu_custom_call.1} parent=1 // pred_check_branch
      %23 = sbr.rel (0) target = $region9
    $region8: #{tpu_custom_call.1} parent=1 // pred_region
      %s25 = ssub.s32 512, 512
      %26 = vsyncadd [#allocation7], %s25
      %s27 = sshll.u32 [#allocation6], 4
      %s28 = int_to_ptr.vmem [resolvable:$true] %s27
      %33 = dma.hbm_to_vmem [thread:$0]  %s1, 512, %s28, [#allocation7], 128, 128, 8
    $region9: #{tpu_custom_call.1} parent=1 // pred_fallthru
      _
    // Predicated region
    $region10: #{tpu_custom_call.1} parent=1 // pred_check
      _
    $region11: #{tpu_custom_call.1} parent=1 // pred_check_branch
      %35 = sbr.rel (0) target = $region13
    $region12: #{tpu_custom_call.1} parent=1 // pred_region
      %36 = dma.done [#allocation4], 256
    $region13: #{tpu_custom_call.1} parent=1 // pred_fallthru
      _
    // Predicated region
    $region14: #{tpu_custom_call.1} parent=1 // pred_check
      _
    $region15: #{tpu_custom_call.1} parent=1 // pred_check_branch
      %38 = sbr.rel (0) target = $region17
    $region16: #{tpu_custom_call.1} parent=1 // pred_region
      %39 = dma.done [#allocation7], 512
    $region17: #{tpu_custom_call.1} parent=1 // pred_fallthru
      _
    %p40 = scmp.eq.s32.totalorder 0, 0
    // Predicated region
    $region18: #{tpu_custom_call.1} parent=1 // pred_check
      %p41 = pneg %p40
    $region19: #{tpu_custom_call.1} parent=1 // pred_check_branch
      %43 = sbr.rel (%p41) target = $region21
    $region20: #{tpu_custom_call.1} parent=1 // pred_region
      %vm44 = vcmask 785408
      %45 = vst.msk [vmem:[#allocation2] sm:$0xff] %vm44, 0.0
      %46 = vst.msk [vmem:[#allocation2 + $0x8] sm:$0xff] %vm44, 0.0
    $region21: #{tpu_custom_call.1} parent=1 // pred_fallthru
      _
    %v47 = vld [vmem:[#allocation2] sm:$0xff]
    %v48 = vld [vmem:[#allocation2 + $0x8] sm:$0xff]
    %v49 = vld [vmem:[#allocation3] sm:$0xff]
    %v50 = vld [vmem:[#allocation3 + $0x8] sm:$0xff]
    %v51 = vld [vmem:[#allocation6] sm:$0xff]
    %v52 = vld [vmem:[#allocation6 + $0x8] sm:$0xff]
    %v53 = vld [vmem:[#allocation6 + $0x10] sm:$0xff]
    %v54 = vld [vmem:[#allocation6 + $0x18] sm:$0xff]
    %vm55 = vcmask 261120
    %v57 = vsel %vm55, %v49, 0
    %v60 = vsel %vm55, %v50, 0
    %62 = vmatprep.subr.mxu0 0.0
    %63 = vmatpush1.msra.mxu0 %v51
    %64 = vmatprep.subr.mxu0 0.0
    %65 = vmatpush1.msra.mxu0 %v52
    %66 = vmatprep.subr.mxu0 0.0
    %67 = vmatpush1.msra.mxu0 %v53
    %68 = vmatprep.subr.mxu0 0.0
    %69 = vmatpush1.msra.mxu0 %v54
    %70 = vmatprep.subr.mxu0 0.0
    %71 = vmatpush1.msra.mxu0 0.0
    %72 = vmatprep.subr.mxu0 0.0
    %73 = vmatpush1.msra.mxu0 0.0
    %74 = vmatprep.subr.mxu0 0.0
    %75 = vmatpush1.msra.mxu0 0.0
    %76 = vmatprep.subr.mxu0 0.0
    %77 = vmatpush1.msra.mxu0 0.0
    %78 = vmatprep.subr.mxu0 0.0
    %79 = vmatpush1.msra.mxu0 0.0
    %80 = vmatprep.subr.mxu0 0.0
    %81 = vmatpush1.msra.mxu0 0.0
    %82 = vmatprep.subr.mxu0 0.0
    %83 = vmatpush1.msra.mxu0 0.0
    %84 = vmatprep.subr.mxu0 0.0
    %85 = vmatpush1.msra.mxu0 0.0
    %86 = vmatprep.subr.mxu0 0.0
    %87 = vmatpush1.msra.mxu0 0.0
    %88 = vmatprep.subr.mxu0 0.0
    %89 = vmatpush1.msra.mxu0 0.0
    %90 = vmatprep.subr.mxu0 0.0
    %91 = vmatpush1.msra.mxu0 0.0
    %92 = vmatprep.subr.mxu0 0.0
    %93 = vmatpush1.msra.mxu0 0.0
    %94 = vmatprep.subr.mxu0 0.0
    %95 = vmatpush1.msra.mxu0 0.0
    %96 = vmatprep.subr.mxu0 0.0
    %97 = vmatpush1.msra.mxu0 0.0
    %98 = vmatprep.subr.mxu0 0.0
    %99 = vmatpush1.msra.mxu0 0.0
    %100 = vmatprep.subr.mxu0 0.0
    %101 = vmatpush1.msra.mxu0 0.0
    %102 = vmatprep.subr.mxu0 0.0
    %103 = vmatpush1.msra.mxu0 0.0
    %104 = vmatprep.subr.mxu0 0.0
    %105 = vmatpush1.msra.mxu0 0.0
    %106 = vmatprep.subr.mxu0 0.0
    %107 = vmatpush1.msra.mxu0 0.0
    %108 = vmatprep.subr.mxu0 0.0
    %109 = vmatpush1.msra.mxu0 0.0
    %110 = vmatprep.subr.mxu0 0.0
    %111 = vmatpush1.msra.mxu0 0.0
    %112 = vmatprep.subr.mxu0 0.0
    %113 = vmatpush1.msra.mxu0 0.0
    %114 = vmatprep.subr.mxu0 0.0
    %115 = vmatpush1.msra.mxu0 0.0
    %116 = vmatprep.subr.mxu0 0.0
    %117 = vmatpush1.msra.mxu0 0.0
    %118 = vmatprep.subr.mxu0 0.0
    %119 = vmatpush1.msra.mxu0 0.0
    %120 = vmatprep.subr.mxu0 0.0
    %121 = vmatpush1.msra.mxu0 0.0
    %122 = vmatprep.subr.mxu0 0.0
    %123 = vmatpush1.msra.mxu0 0.0
    %124 = vmatprep.subr.mxu0 0.0
    %125 = vmatpush1.msra.mxu0 0.0
    %126 = vmatprep.mubr.f32.mxu0 0.0
    %127 = vmatmul.mubr.f32.gmra.mrb[0].mxu0 %v57
    %v128 = vpop.f32.mrb[0].mxu0
    %v129 = vadd.f32 0.0, %v128
    %v130 = vpop.f32.mrb[0].mxu0
    %131 = vmatprep.mubr.f32.mxu0 0.0
    %132 = vmatmul.mubr.f32.gmra.mrb[0].mxu0 %v60
    %v133 = vpop.f32.mrb[0].mxu0
    %v134 = vadd.f32 0.0, %v133
    %v135 = vpop.f32.mrb[0].mxu0
    %136 = vdwg.mxu0
    %v137 = vadd.f32 %v47, %v129
    %v138 = vadd.f32 %v48, %v134
    %vm139 = vcmask 785408
    %140 = vst.msk [vmem:[#allocation2] sm:$0xff] %vm139, %v137
    %141 = vst.msk [vmem:[#allocation2 + $0x8] sm:$0xff] %vm139, %v138
    // Predicated region
    $region22: #{tpu_custom_call.1} parent=1 // pred_check
      %p142 = pneg %p40
    $region23: #{tpu_custom_call.1} parent=1 // pred_check_branch
      %144 = sbr.rel (%p142) target = $region25
    $region24: #{tpu_custom_call.1} parent=1 // pred_region
      %v145 = vld [vmem:[#allocation2] sm:$0xff]
      %v146 = vld [vmem:[#allocation2 + $0x8] sm:$0xff]
      %147 = vst.msk [vmem:[#allocation8] sm:$0xff] %vm139, %v145
      %148 = vst.msk [vmem:[#allocation8 + $0x8] sm:$0xff] %vm139, %v146
    $region25: #{tpu_custom_call.1} parent=1 // pred_fallthru
      _
    // Predicated region
    $region26: #{tpu_custom_call.1} parent=1 // pred_check
      _
    $region27: #{tpu_custom_call.1} parent=1 // pred_check_branch
      %150 = sbr.rel (0) target = $region29
    $region28: #{tpu_custom_call.1} parent=1 // pred_region
      %s152 = ssub.s32 256, 256
      %153 = vsyncadd [#allocation5], %s152
      %s154 = sshll.u32 [#allocation8], 4
      %s155 = int_to_ptr.vmem [resolvable:$true] %s154
      %160 = dma.vmem_to_hbm [thread:$0]  %s155, 256, %s2, [#allocation5], 128, 128, 8
    $region29: #{tpu_custom_call.1} parent=1 // pred_fallthru
      _
    // Predicated region
    $region30: #{tpu_custom_call.1} parent=1 // pred_check
      _
    $region31: #{tpu_custom_call.1} parent=1 // pred_check_branch
      %162 = sbr.rel (0) target = $region33
    $region32: #{tpu_custom_call.1} parent=1 // pred_region
      %163 = dma.done [#allocation5], 256
    $region33: #{tpu_custom_call.1} parent=1 // pred_fallthru
      _
    %164 = vsyncpa [#allocation4], 1
    %165 = vsyncpa [#allocation7], 1
    %166 = vsyncpa [#allocation5], 1

</llo_original>
